<compile_context>
chip_gen: v6e
topology: v6e:2x2x1
jax: 0.10.0
libtpu: 0.0.40
codegen_flags: <defaults>
</compile_context>

<pallas_src>
import jax
import jax.numpy as jnp
from jax.experimental import pallas as pl
from jax.experimental.pallas import tpu as pltpu


_LANE = 128
_HP = _LANE   # hidden 100 -> 128 lanes (lane-dense matmul tiles)
_OP = _LANE   # output 2   -> 128 lanes (lane-dense store; sliced in wrapper)


def _round_up(n, m):
    return (n + m - 1) // m * m


# ------------------------------ Pallas kernel ------------------------------

def _netd_da_kernel(x_ref, w1_ref, s1_ref, w2_ref, s2_ref, w3_ref, b3_ref, o_ref):
    # x_ref:  [TN, D]   f32 input rows (cast to bf16 here, not in the wrapper)
    # w*_ref: [in, out] bf16 weights with BatchNorm scale folded in
    # s*_ref: [1, Hp]   f32 folded BatchNorm shift
    # b3_ref: [1, Op]   f32 fc3 bias (padded)
    # o_ref:  [TN, Op]  bf16 lane-dense output (real logits in [:, :2])
    x = x_ref[...].astype(jnp.bfloat16)

    h = jnp.dot(x, w1_ref[...], preferred_element_type=jnp.float32)
    h = jnp.maximum(h + s1_ref[...], 0.0)                      # fc1 + BN1 + ReLU

    h = jnp.dot(h.astype(jnp.bfloat16), w2_ref[...],
                preferred_element_type=jnp.float32)
    h = jnp.maximum(h + s2_ref[...], 0.0)                      # fc2 + BN2 + ReLU

    out = jnp.dot(h.astype(jnp.bfloat16), w3_ref[...],
                  preferred_element_type=jnp.float32)          # fc3
    o_ref[...] = (out + b3_ref[...]).astype(o_ref.dtype)


# ------------------------------ host wrapper -------------------------------

def _fold_linear_bn(w, b, gamma, beta, mean, var, eps=1e-5):
    # BN(Wx + b) = scale * (Wx + b - mean) + beta,  scale = gamma/sqrt(var+eps)
    scale = gamma / jnp.sqrt(var + eps)
    w_folded = w * scale[:, None]            # [out, in]
    shift = scale * (b - mean) + beta        # [out]
    return w_folded, shift


def _pad2(a, rows, cols):
    return jnp.pad(a, ((0, rows - a.shape[0]), (0, cols - a.shape[1])))


def _pick_row_tile(N, D):
    """Row tile TN and padded row count Np (multiple of TN).

    Keeps the double-buffered f32 x tile around <= ~4 MiB so the default
    scoped VMEM limit is safe on all generations (v5e 16 MiB, v6e 32 MiB,
    v7x 32/64 MiB).  On v6e with large N, a bigger TN + explicit
    vmem_limit_bytes would get closer to the HBM roofline.
    """
    tn = (4 * 1024 * 1024) // max(D * 4, 1)
    tn = max(8, min(512, tn - tn % 8))
    n_pad8 = _round_up(N, 8)
    if n_pad8 <= tn:
        return n_pad8, n_pad8
    return tn, _round_up(N, tn)


def netd_da_forward(x, params, eps=1e-5):
    """Eval-mode netD_da forward as one fused, row-tiled Pallas kernel.

    x: [N, feat_d] float32. Returns float32 logits [N, 2].
    """
    N, D = x.shape
    hidden = params["fc1_w"].shape[0]
    n_out = params["fc3_w"].shape[0]

    w1f, s1 = _fold_linear_bn(params["fc1_w"], params["fc1_b"], *params["bn1"], eps=eps)
    w2f, s2 = _fold_linear_bn(params["fc2_w"], params["fc2_b"], *params["bn2"], eps=eps)

    # [in, out] matrices, zero-padded on the 100-wide dims to 128 lanes.
    # Padded hidden columns get shift 0 -> ReLU(0) = 0, and the matching rows
    # of the next weight are zero, so the padding never perturbs real outputs.
    w1 = _pad2(w1f.T, D, _HP).astype(jnp.bfloat16)
    w2 = _pad2(w2f.T, _HP, _HP).astype(jnp.bfloat16)
    w3 = _pad2(params["fc3_w"].T, _HP, _OP).astype(jnp.bfloat16)
    s1p = _pad2(s1[None, :], 1, _HP).astype(jnp.float32)
    s2p = _pad2(s2[None, :], 1, _HP).astype(jnp.float32)
    b3p = _pad2(params["fc3_b"][None, :], 1, _OP).astype(jnp.float32)

    # Row-pad only (handles the ragged last tile); NO feature pad, NO cast:
    # the kernel reads f32 rows and casts to bf16 in VMEM.
    TN, Np = _pick_row_tile(N, D)
    xp = x if Np == N else jnp.pad(x, ((0, Np - N), (0, 0)))

    grid = (Np // TN,)

    cost = pl.CostEstimate(
        flops=2 * N * (D * hidden + hidden * hidden + hidden * n_out),
        transcendentals=0,
        bytes_accessed=(N * D * 4                      # x read (f32)
                        + Np * _OP * 2                 # padded bf16 logits write
                        + (D * _HP + _HP * _HP + _HP * _OP) * 2   # bf16 weights
                        + (2 * _HP + _OP) * 4),        # f32 shifts / bias
    )

    out = pl.pallas_call(
        _netd_da_kernel,
        out_shape=jax.ShapeDtypeStruct((Np, _OP), jnp.bfloat16),
        grid=grid,
        in_specs=[
            pl.BlockSpec((TN, D), lambda i: (i, 0)),       # streamed rows
            pl.BlockSpec((D, _HP), lambda i: (0, 0)),      # weights: VMEM-resident
            pl.BlockSpec((1, _HP), lambda i: (0, 0)),
            pl.BlockSpec((_HP, _HP), lambda i: (0, 0)),
            pl.BlockSpec((1, _HP), lambda i: (0, 0)),
            pl.BlockSpec((_HP, _OP), lambda i: (0, 0)),
            pl.BlockSpec((1, _OP), lambda i: (0, 0)),
        ],
        out_specs=pl.BlockSpec((TN, _OP), lambda i: (i, 0)),
        compiler_params=pltpu.CompilerParams(
            dimension_semantics=("parallel",)),            # megacore on v7x
        cost_estimate=cost,
    )(xp, w1, s1p, w2, s2p, w3, b3p)

    return out[:N, :n_out].astype(jnp.float32)


# --------------------------- reference (plain JAX) --------------------------

def reference_forward(x, params, eps=1e-5):
    def bn(h, p):
        g, b, m, v = p
        return g * (h - m) / jnp.sqrt(v + eps) + b
    h = jnp.maximum(bn(x @ params["fc1_w"].T + params["fc1_b"], params["bn1"]), 0.0)
    h = jnp.maximum(bn(h @ params["fc2_w"].T + params["fc2_b"], params["bn2"]), 0.0)
    return h @ params["fc3_w"].T + params["fc3_b"]


# ----------------------------- parameter setup ------------------------------

def init_params(key, feat_d, hidden=100, n_out=2):
    ks = jax.random.split(key, 9)

    def linear(kw, kb, out_d, in_d):
        lim = 1.0 / (in_d ** 0.5)
        w = jax.random.uniform(kw, (out_d, in_d), jnp.float32, -lim, lim)
        b = jax.random.uniform(kb, (out_d,), jnp.float32, -lim, lim)
        return w, b

    def bn(k, c):
        k1, k2, k3, k4 = jax.random.split(k, 4)
        gamma = 1.0 + 0.1 * jax.random.normal(k1, (c,), jnp.float32)
        beta = 0.1 * jax.random.normal(k2, (c,), jnp.float32)
        mean = 0.1 * jax.random.normal(k3, (c,), jnp.float32)
        var = jnp.abs(jax.random.normal(k4, (c,), jnp.float32)) + 0.5
        return (gamma, beta, mean, var)

    fc1_w, fc1_b = linear(ks[0], ks[1], hidden, feat_d)
    fc2_w, fc2_b = linear(ks[2], ks[3], hidden, hidden)
    fc3_w, fc3_b = linear(ks[4], ks[5], n_out, hidden)
    return {
        "fc1_w": fc1_w, "fc1_b": fc1_b, "bn1": bn(ks[6], hidden),
        "fc2_w": fc2_w, "fc2_b": fc2_b, "bn2": bn(ks[7], hidden),
        "fc3_w": fc3_w, "fc3_b": fc3_b,
    }


if __name__ == "__main__":
    key = jax.random.PRNGKey(0)
    pkey, xkey = jax.random.split(key)
    feat_d = 256                                   # small feat_d for the demo
    params = init_params(pkey, feat_d)
    x = jax.random.normal(xkey, (2, feat_d), jnp.float32)

    fwd = jax.jit(lambda xx: netd_da_forward(xx, params))
    out = jax.block_until_ready(fwd(x))

    assert out.shape == (2, 2), out.shape
    assert bool(jnp.all(jnp.isfinite(out)))

    ref = reference_forward(x, params)
    max_err = float(jnp.max(jnp.abs(out - ref)))
    assert max_err < 0.1, f"max abs error vs f32 reference: {max_err}"

    print("KERNEL_OK")
</pallas_src>

<mosaic_0001>
module attributes {stable_mosaic.version = 11 : i64} {
  func.func @_netd_da_kernel(%arg0: i32, %arg1: memref<8x256xf32, #tpu.memory_space<vmem>>, %arg2: memref<256x128xbf16, #tpu.memory_space<vmem>>, %arg3: memref<1x128xf32, #tpu.memory_space<vmem>>, %arg4: memref<128x128xbf16, #tpu.memory_space<vmem>>, %arg5: memref<1x128xf32, #tpu.memory_space<vmem>>, %arg6: memref<128x128xbf16, #tpu.memory_space<vmem>>, %arg7: memref<1x128xf32, #tpu.memory_space<vmem>>, %arg8: memref<8x128xbf16, #tpu.memory_space<vmem>>) attributes {dimension_semantics = [#tpu.dimension_semantics<parallel>], iteration_bounds = array<i64: 1>, scalar_prefetch = 0 : i64, scratch_operands = 0 : i64, tpu.core_type = #tpu.core_type<tc>, window_params = [{transform_indices = @transform_0, window_bounds = array<i64: 8, 256>}, {pipeline_mode = #tpu.pipeline_mode<synchronous>, transform_indices = @transform_1, window_bounds = array<i64: 256, 128>}, {pipeline_mode = #tpu.pipeline_mode<synchronous>, transform_indices = @transform_2, window_bounds = array<i64: 1, 128>}, {pipeline_mode = #tpu.pipeline_mode<synchronous>, transform_indices = @transform_3, window_bounds = array<i64: 128, 128>}, {pipeline_mode = #tpu.pipeline_mode<synchronous>, transform_indices = @transform_4, window_bounds = array<i64: 1, 128>}, {pipeline_mode = #tpu.pipeline_mode<synchronous>, transform_indices = @transform_5, window_bounds = array<i64: 128, 128>}, {pipeline_mode = #tpu.pipeline_mode<synchronous>, transform_indices = @transform_6, window_bounds = array<i64: 1, 128>}, {transform_indices = @transform_7, window_bounds = array<i64: 8, 128>}]} {
    %c0 = arith.constant 0 : index
    %c0_0 = arith.constant 0 : index
    %0 = vector.load %arg1[%c0, %c0_0] : memref<8x256xf32, #tpu.memory_space<vmem>>, vector<8x256xf32>
    %1 = arith.truncf %0 : vector<8x256xf32> to vector<8x256xbf16>
    %c0_1 = arith.constant 0 : index
    %c0_2 = arith.constant 0 : index
    %2 = vector.load %arg2[%c0_1, %c0_2] : memref<256x128xbf16, #tpu.memory_space<vmem>>, vector<256x128xbf16>
    %cst = arith.constant dense<0.000000e+00> : vector<8x128xf32>
    %3 = tpu.matmul %1, %2, %cst {dimension_numbers = #tpu.dot_dimension_numbers<[1], [0], [0], [1], [0, 0, 1, 1], [], []>} : vector<8x256xbf16>, vector<256x128xbf16>, vector<8x128xf32> -> vector<8x128xf32>
    %c0_3 = arith.constant 0 : index
    %c0_4 = arith.constant 0 : index
    %4 = vector.load %arg3[%c0_3, %c0_4] : memref<1x128xf32, #tpu.memory_space<vmem>>, vector<1x128xf32>
    %5 = vector.broadcast %4 : vector<1x128xf32> to vector<8x128xf32>
    %6 = arith.addf %3, %5 : vector<8x128xf32>
    %cst_5 = arith.constant 0.000000e+00 : f32
    %7 = vector.broadcast %cst_5 : f32 to vector<8x128xf32>
    %8 = arith.maximumf %6, %7 : vector<8x128xf32>
    %9 = arith.truncf %8 : vector<8x128xf32> to vector<8x128xbf16>
    %c0_6 = arith.constant 0 : index
    %c0_7 = arith.constant 0 : index
    %10 = vector.load %arg4[%c0_6, %c0_7] : memref<128x128xbf16, #tpu.memory_space<vmem>>, vector<128x128xbf16>
    %cst_8 = arith.constant dense<0.000000e+00> : vector<8x128xf32>
    %11 = tpu.matmul %9, %10, %cst_8 {dimension_numbers = #tpu.dot_dimension_numbers<[1], [0], [0], [1], [0, 0, 1, 1], [], []>} : vector<8x128xbf16>, vector<128x128xbf16>, vector<8x128xf32> -> vector<8x128xf32>
    %c0_9 = arith.constant 0 : index
    %c0_10 = arith.constant 0 : index
    %12 = vector.load %arg5[%c0_9, %c0_10] : memref<1x128xf32, #tpu.memory_space<vmem>>, vector<1x128xf32>
    %13 = vector.broadcast %12 : vector<1x128xf32> to vector<8x128xf32>
    %14 = arith.addf %11, %13 : vector<8x128xf32>
    %cst_11 = arith.constant 0.000000e+00 : f32
    %15 = vector.broadcast %cst_11 : f32 to vector<8x128xf32>
    %16 = arith.maximumf %14, %15 : vector<8x128xf32>
    %17 = arith.truncf %16 : vector<8x128xf32> to vector<8x128xbf16>
    %c0_12 = arith.constant 0 : index
    %c0_13 = arith.constant 0 : index
    %18 = vector.load %arg6[%c0_12, %c0_13] : memref<128x128xbf16, #tpu.memory_space<vmem>>, vector<128x128xbf16>
    %cst_14 = arith.constant dense<0.000000e+00> : vector<8x128xf32>
    %19 = tpu.matmul %17, %18, %cst_14 {dimension_numbers = #tpu.dot_dimension_numbers<[1], [0], [0], [1], [0, 0, 1, 1], [], []>} : vector<8x128xbf16>, vector<128x128xbf16>, vector<8x128xf32> -> vector<8x128xf32>
    %c0_15 = arith.constant 0 : index
    %c0_16 = arith.constant 0 : index
    %20 = vector.load %arg7[%c0_15, %c0_16] : memref<1x128xf32, #tpu.memory_space<vmem>>, vector<1x128xf32>
    %21 = vector.broadcast %20 : vector<1x128xf32> to vector<8x128xf32>
    %22 = arith.addf %19, %21 : vector<8x128xf32>
    %23 = arith.truncf %22 : vector<8x128xf32> to vector<8x128xbf16>
    %c0_17 = arith.constant 0 : index
    %c0_18 = arith.constant 0 : index
    %24 = vector.load %arg8[%c0_17, %c0_18] : memref<8x128xbf16, #tpu.memory_space<vmem>>, vector<8x128xbf16>
    tpu.vector_store %arg8[%c0_17, %c0_18], %23 {strides = array<i32>} : memref<8x128xbf16, #tpu.memory_space<vmem>>, vector<8x128xbf16>,
    return
  }
  func.func @transform_0(%arg0: i32) -> (i32, i32) {
    %c0_i32 = arith.constant 0 : i32
    %c0_i32_0 = arith.constant 0 : i32
    return %arg0, %c0_i32 : i32, i32
  }
  func.func @transform_1(%arg0: i32) -> (i32, i32) {
    %c0_i32 = arith.constant 0 : i32
    %c0_i32_0 = arith.constant 0 : i32
    %c0_i32_1 = arith.constant 0 : i32
    return %c0_i32, %c0_i32_0 : i32, i32
  }
  func.func @transform_2(%arg0: i32) -> (i32, i32) {
    %c0_i32 = arith.constant 0 : i32
    %c0_i32_0 = arith.constant 0 : i32
    %c0_i32_1 = arith.constant 0 : i32
    return %c0_i32, %c0_i32_0 : i32, i32
  }
  func.func @transform_3(%arg0: i32) -> (i32, i32) {
    %c0_i32 = arith.constant 0 : i32
    %c0_i32_0 = arith.constant 0 : i32
    %c0_i32_1 = arith.constant 0 : i32
    return %c0_i32, %c0_i32_0 : i32, i32
  }
  func.func @transform_4(%arg0: i32) -> (i32, i32) {
    %c0_i32 = arith.constant 0 : i32
    %c0_i32_0 = arith.constant 0 : i32
    %c0_i32_1 = arith.constant 0 : i32
    return %c0_i32, %c0_i32_0 : i32, i32
  }
  func.func @transform_5(%arg0: i32) -> (i32, i32) {
    %c0_i32 = arith.constant 0 : i32
    %c0_i32_0 = arith.constant 0 : i32
    %c0_i32_1 = arith.constant 0 : i32
    return %c0_i32, %c0_i32_0 : i32, i32
  }
  func.func @transform_6(%arg0: i32) -> (i32, i32) {
    %c0_i32 = arith.constant 0 : i32
    %c0_i32_0 = arith.constant 0 : i32
    %c0_i32_1 = arith.constant 0 : i32
    return %c0_i32, %c0_i32_0 : i32, i32
  }
  func.func @transform_7(%arg0: i32) -> (i32, i32) {
    %c0_i32 = arith.constant 0 : i32
    %c0_i32_0 = arith.constant 0 : i32
    return %arg0, %c0_i32 : i32, i32
  }
}

</mosaic_0001>

<llo_original>
// kernel: _lambda_.1
$region0: #{_lambda_.1}
  #allocation0 [shape = 'u32[]', space=smem, size = 0x4, offset = 0x4, fixed_abs, tag = 'smem constant byte address 0x4 - core index']
  #allocation1 [shape = 'u32[144,128]{1,0:T(1,128)}', space=vmem, size = 0x12000, scoped, tag = 'internal scratch']
  %s0 = inlined_call_operand.vmem [shape: f32[8,256], index: 0, kind: input, shape index: {}]
  %s1 = inlined_call_operand.hbm [shape: bf16[256,128], index: 1, kind: input, shape index: {}]
  %s2 = inlined_call_operand.vmem [shape: f32[1,128], index: 2, kind: input, shape index: {}]
  %s3 = inlined_call_operand.hbm [shape: bf16[128,128], index: 3, kind: input, shape index: {}]
  %s4 = inlined_call_operand.vmem [shape: f32[1,128], index: 4, kind: input, shape index: {}]
  %s5 = inlined_call_operand.hbm [shape: bf16[128,128], index: 5, kind: input, shape index: {}]
  %s6 = inlined_call_operand.vmem [shape: f32[1,128], index: 6, kind: input, shape index: {}]
  %s7 = inlined_call_operand.vmem [shape: bf16[8,128], index: 7, kind: output, shape index: {}]
  %s8 = sld [smem:[#allocation0]]
  $region50: #{_lambda_.1} parent=0
    _
  %s10 = ssub.s32 1, %s8
  %s11 = scalar_select 0, %s10, %s8
  $region1: #{_lambda_.1} parent=0
    #allocation2 [shape = 'u8[65536]{0}', space=vmem, size = 0x10000, scoped, tag = 'input window, operand 1, single buffered']
    #allocation3 [shape = 's32[1]{0}', space=sflag, size = 0x4, scoped, tag = 'scoped memory for _lambda_.1']
    #allocation4 [shape = 'u8[32768]{0}', space=vmem, size = 0x8000, scoped, tag = 'input window, operand 3, single buffered']
    #allocation5 [shape = 's32[1]{0}', space=sflag, size = 0x4, scoped, tag = 'scoped memory for _lambda_.1']
    #allocation6 [shape = 'u8[32768]{0}', space=vmem, size = 0x8000, scoped, tag = 'input window, operand 5, single buffered']
    %12 = vsyncpa [#allocation3], 0
    %13 = vsyncpa [#allocation5], 0
    // Predicated region
    $region2: #{_lambda_.1} parent=1 // pred_check
      _
    $region3: #{_lambda_.1} parent=1 // pred_check_branch
      %15 = sbr.rel (0) target = $region5
    $region4: #{_lambda_.1} parent=1 // pred_region
      _
    $region5: #{_lambda_.1} parent=1 // pred_fallthru
      _
    // Predicated region
    $region6: #{_lambda_.1} parent=1 // pred_check
      _
    $region7: #{_lambda_.1} parent=1 // pred_check_branch
      %17 = sbr.rel (0) target = $region9
    $region8: #{_lambda_.1} parent=1 // pred_region
      %s19 = ssub.s32 2048, 2048
      %20 = vsyncadd [#allocation3], %s19
      %s21 = sshll.u32 [#allocation2], 4
      %s22 = int_to_ptr.vmem [resolvable:$true] %s21
      %27 = dma.hbm_to_vmem [thread:$0]  %s1, 2048, %s22, [#allocation3], 64, 64, 4
    $region9: #{_lambda_.1} parent=1 // pred_fallthru
      _
    // Predicated region
    $region10: #{_lambda_.1} parent=1 // pred_check
      _
    $region11: #{_lambda_.1} parent=1 // pred_check_branch
      %29 = sbr.rel (0) target = $region13
    $region12: #{_lambda_.1} parent=1 // pred_region
      _
    $region13: #{_lambda_.1} parent=1 // pred_fallthru
      _
    // Predicated region
    $region14: #{_lambda_.1} parent=1 // pred_check
      _
    $region15: #{_lambda_.1} parent=1 // pred_check_branch
      %31 = sbr.rel (0) target = $region17
    $region16: #{_lambda_.1} parent=1 // pred_region
      %s33 = ssub.s32 1024, 1024
      %34 = vsyncadd [#allocation5], %s33
      %s35 = sshll.u32 [#allocation4], 4
      %s36 = int_to_ptr.vmem [resolvable:$true] %s35
      %41 = dma.hbm_to_vmem [thread:$0]  %s3, 1024, %s36, [#allocation5], 64, 64, 4
    $region17: #{_lambda_.1} parent=1 // pred_fallthru
      _
    // Predicated region
    $region18: #{_lambda_.1} parent=1 // pred_check
      _
    $region19: #{_lambda_.1} parent=1 // pred_check_branch
      %43 = sbr.rel (0) target = $region21
    $region20: #{_lambda_.1} parent=1 // pred_region
      _
    $region21: #{_lambda_.1} parent=1 // pred_fallthru
      _
    // Predicated region
    $region22: #{_lambda_.1} parent=1 // pred_check
      _
    $region23: #{_lambda_.1} parent=1 // pred_check_branch
      %45 = sbr.rel (0) target = $region25
    $region24: #{_lambda_.1} parent=1 // pred_region
      %s47 = ssub.s32 1024, 1024
      %48 = vsyncadd [#allocation5], %s47
      %s49 = sshll.u32 [#allocation6], 4
      %s50 = int_to_ptr.vmem [resolvable:$true] %s49
      %55 = dma.hbm_to_vmem [thread:$0]  %s5, 1024, %s50, [#allocation5], 64, 64, 4
    $region25: #{_lambda_.1} parent=1 // pred_fallthru
      _
    // Predicated region
    $region26: #{_lambda_.1} parent=1 // pred_check
      _
    $region27: #{_lambda_.1} parent=1 // pred_check_branch
      %57 = sbr.rel (0) target = $region29
    $region28: #{_lambda_.1} parent=1 // pred_region
      _
    $region29: #{_lambda_.1} parent=1 // pred_fallthru
      _
    // Predicated region
    $region30: #{_lambda_.1} parent=1 // pred_check
      _
    $region31: #{_lambda_.1} parent=1 // pred_check_branch
      %59 = sbr.rel (0) target = $region33
    $region32: #{_lambda_.1} parent=1 // pred_region
      %60 = dma.done [#allocation3], 2048
    $region33: #{_lambda_.1} parent=1 // pred_fallthru
      _
    // Predicated region
    $region34: #{_lambda_.1} parent=1 // pred_check
      _
    $region35: #{_lambda_.1} parent=1 // pred_check_branch
      %62 = sbr.rel (0) target = $region37
    $region36: #{_lambda_.1} parent=1 // pred_region
      %63 = dma.done [#allocation5], 1024
    $region37: #{_lambda_.1} parent=1 // pred_fallthru
      _
    // Predicated region
    $region38: #{_lambda_.1} parent=1 // pred_check
      _
    $region39: #{_lambda_.1} parent=1 // pred_check_branch
      %65 = sbr.rel (0) target = $region41
    $region40: #{_lambda_.1} parent=1 // pred_region
      %66 = dma.done [#allocation5], 1024
    $region41: #{_lambda_.1} parent=1 // pred_fallthru
      _
    %v68 = vld [vmem:[%s0] sm:$0xff]
    %v69 = vld [vmem:[%s0 + $0x8] sm:$0xff]
    %v70 = vpack.c.bf16 %v68, %v68
    %v71 = vpack.c.bf16 %v69, %v69
    %v72 = vld [vmem:[#allocation2] sm:$0xf]
    %v73 = vld [vmem:[#allocation2 + $0x4] sm:$0xf]
    %v74 = vld [vmem:[#allocation2 + $0x8] sm:$0xf]
    %v75 = vld [vmem:[#allocation2 + $0xc] sm:$0xf]
    %v76 = vld [vmem:[#allocation2 + $0x10] sm:$0xf]
    %v77 = vld [vmem:[#allocation2 + $0x14] sm:$0xf]
    %v78 = vld [vmem:[#allocation2 + $0x18] sm:$0xf]
    %v79 = vld [vmem:[#allocation2 + $0x1c] sm:$0xf]
    %v80 = vld [vmem:[#allocation2 + $0x20] sm:$0xf]
    %v81 = vld [vmem:[#allocation2 + $0x24] sm:$0xf]
    %v82 = vld [vmem:[#allocation2 + $0x28] sm:$0xf]
    %v83 = vld [vmem:[#allocation2 + $0x2c] sm:$0xf]
    %v84 = vld [vmem:[#allocation2 + $0x30] sm:$0xf]
    %v85 = vld [vmem:[#allocation2 + $0x34] sm:$0xf]
    %v86 = vld [vmem:[#allocation2 + $0x38] sm:$0xf]
    %v87 = vld [vmem:[#allocation2 + $0x3c] sm:$0xf]
    %v88 = vld [vmem:[#allocation2 + $0x40] sm:$0xf]
    %v89 = vld [vmem:[#allocation2 + $0x44] sm:$0xf]
    %v90 = vld [vmem:[#allocation2 + $0x48] sm:$0xf]
    %v91 = vld [vmem:[#allocation2 + $0x4c] sm:$0xf]
    %v92 = vld [vmem:[#allocation2 + $0x50] sm:$0xf]
    %v93 = vld [vmem:[#allocation2 + $0x54] sm:$0xf]
    %v94 = vld [vmem:[#allocation2 + $0x58] sm:$0xf]
    %v95 = vld [vmem:[#allocation2 + $0x5c] sm:$0xf]
    %v96 = vld [vmem:[#allocation2 + $0x60] sm:$0xf]
    %v97 = vld [vmem:[#allocation2 + $0x64] sm:$0xf]
    %v98 = vld [vmem:[#allocation2 + $0x68] sm:$0xf]
    %v99 = vld [vmem:[#allocation2 + $0x6c] sm:$0xf]
    %v100 = vld [vmem:[#allocation2 + $0x70] sm:$0xf]
    %v101 = vld [vmem:[#allocation2 + $0x74] sm:$0xf]
    %v102 = vld [vmem:[#allocation2 + $0x78] sm:$0xf]
    %v103 = vld [vmem:[#allocation2 + $0x7c] sm:$0xf]
    %v104 = vld [vmem:[%s2] sm:$0x1]
    %v106 = vlaneseq
    %v107 = vshrl.u32 %v106, 7
    %v108 = vsub.s32 0, %v107
    %v109 = vrot.slane %v104, %v108
    %v143 = vunpack.c.l.b16 %v72
    %v144 = vunpack.c.l.b16 %v73
    %v145 = vunpack.c.l.b16 %v74
    %v146 = vunpack.c.l.b16 %v75
    %v147 = vunpack.c.l.b16 %v76
    %v148 = vunpack.c.l.b16 %v77
    %v149 = vunpack.c.l.b16 %v78
    %v150 = vunpack.c.l.b16 %v79
    %v151 = vunpack.c.l.b16 %v80
    %v152 = vunpack.c.l.b16 %v81
    %v153 = vunpack.c.l.b16 %v82
    %v154 = vunpack.c.l.b16 %v83
    %v155 = vunpack.c.l.b16 %v84
    %v156 = vunpack.c.l.b16 %v85
    %v157 = vunpack.c.l.b16 %v86
    %v158 = vunpack.c.l.b16 %v87
    %v159 = vunpack.c.l.b16 %v88
    %v160 = vunpack.c.l.b16 %v89
    %v161 = vunpack.c.l.b16 %v90
    %v162 = vunpack.c.l.b16 %v91
    %v163 = vunpack.c.l.b16 %v92
    %v164 = vunpack.c.l.b16 %v93
    %v165 = vunpack.c.l.b16 %v94
    %v166 = vunpack.c.l.b16 %v95
    %v167 = vunpack.c.l.b16 %v96
    %v168 = vunpack.c.l.b16 %v97
    %v169 = vunpack.c.l.b16 %v98
    %v170 = vunpack.c.l.b16 %v99
    %v171 = vunpack.c.l.b16 %v100
    %v172 = vunpack.c.l.b16 %v101
    %v173 = vunpack.c.l.b16 %v102
    %v174 = vunpack.c.l.b16 %v103
    %v175 = vpack.c.b16 %v144, %v143
    %v176 = vpack.c.b16 %v146, %v145
    %v177 = vpack.c.b16 %v148, %v147
    %v178 = vpack.c.b16 %v150, %v149
    %v179 = vpack.c.b16 %v152, %v151
    %v180 = vpack.c.b16 %v154, %v153
    %v181 = vpack.c.b16 %v156, %v155
    %v182 = vpack.c.b16 %v158, %v157
    %v183 = vpack.c.b16 %v160, %v159
    %v184 = vpack.c.b16 %v162, %v161
    %v185 = vpack.c.b16 %v164, %v163
    %v186 = vpack.c.b16 %v166, %v165
    %v187 = vpack.c.b16 %v168, %v167
    %v188 = vpack.c.b16 %v170, %v169
    %v189 = vpack.c.b16 %v172, %v171
    %v190 = vpack.c.b16 %v174, %v173
    %207 = vmatprep.subr.bf16.mxu0 0
    %208 = vmatpush1.bf16.msra.mxu0 %v182
    %209 = vmatprep.subr.bf16.mxu0 0
    %210 = vmatpush1.bf16.msra.mxu0 %v181
    %211 = vmatprep.subr.bf16.mxu0 0
    %212 = vmatpush1.bf16.msra.mxu0 %v180
    %213 = vmatprep.subr.bf16.mxu0 0
    %214 = vmatpush1.bf16.msra.mxu0 %v179
    %215 = vmatprep.subr.bf16.mxu0 0
    %216 = vmatpush1.bf16.msra.mxu0 %v178
    %217 = vmatprep.subr.bf16.mxu0 0
    %218 = vmatpush1.bf16.msra.mxu0 %v177
    %219 = vmatprep.subr.bf16.mxu0 0
    %220 = vmatpush1.bf16.msra.mxu0 %v176
    %221 = vmatprep.subr.bf16.mxu0 0
    %222 = vmatpush1.bf16.msra.mxu0 %v175
    %223 = vmatprep.subr.bf16.mxu0 0
    %224 = vmatpush2.bf16.msra.mxu0 %v190
    %225 = vmatprep.subr.bf16.mxu0 0
    %226 = vmatpush2.bf16.msra.mxu0 %v189
    %227 = vmatprep.subr.bf16.mxu0 0
    %228 = vmatpush2.bf16.msra.mxu0 %v188
    %229 = vmatprep.subr.bf16.mxu0 0
    %230 = vmatpush2.bf16.msra.mxu0 %v187
    %231 = vmatprep.subr.bf16.mxu0 0
    %232 = vmatpush2.bf16.msra.mxu0 %v186
    %233 = vmatprep.subr.bf16.mxu0 0
    %234 = vmatpush2.bf16.msra.mxu0 %v185
    %235 = vmatprep.subr.bf16.mxu0 0
    %236 = vmatpush2.bf16.msra.mxu0 %v184
    %237 = vmatprep.subr.bf16.mxu0 0
    %238 = vmatpush2.bf16.msra.mxu0 %v183
    %239 = vmatprep.mubr.bf16.mxu0 %v71
    %240 = vmatmul.mubr.bf16.gmra.mxu0 %v70
    %v241 = vpop.f32.mrf.mxu0
    %v242 = vadd.f32 %v109, %v241
    %v243 = vpop.f32.mrf.mxu0
    %v244 = vpop.f32.mrf.mxu0
    %v245 = vpop.f32.mrf.mxu0
    %246 = vdwg.mxu0
    %v247 = vmax.f32 %v242, 0.0
    %v248 = vpack.c.bf16 %v247, %v247
    %v249 = vld [vmem:[#allocation4] sm:$0xf]
    %v250 = vld [vmem:[#allocation4 + $0x4] sm:$0xf]
    %v251 = vld [vmem:[#allocation4 + $0x8] sm:$0xf]
    %v252 = vld [vmem:[#allocation4 + $0xc] sm:$0xf]
    %v253 = vld [vmem:[#allocation4 + $0x10] sm:$0xf]
    %v254 = vld [vmem:[#allocation4 + $0x14] sm:$0xf]
    %v255 = vld [vmem:[#allocation4 + $0x18] sm:$0xf]
    %v256 = vld [vmem:[#allocation4 + $0x1c] sm:$0xf]
    %v257 = vld [vmem:[#allocation4 + $0x20] sm:$0xf]
    %v258 = vld [vmem:[#allocation4 + $0x24] sm:$0xf]
    %v259 = vld [vmem:[#allocation4 + $0x28] sm:$0xf]
    %v260 = vld [vmem:[#allocation4 + $0x2c] sm:$0xf]
    %v261 = vld [vmem:[#allocation4 + $0x30] sm:$0xf]
    %v262 = vld [vmem:[#allocation4 + $0x34] sm:$0xf]
    %v263 = vld [vmem:[#allocation4 + $0x38] sm:$0xf]
    %v264 = vld [vmem:[#allocation4 + $0x3c] sm:$0xf]
    %v265 = vld [vmem:[%s4] sm:$0x1]
    %v267 = vlaneseq
    %v268 = vshrl.u32 %v267, 7
    %v269 = vsub.s32 0, %v268
    %v270 = vrot.slane %v265, %v269
    %v288 = vunpack.c.l.b16 %v249
    %v289 = vunpack.c.l.b16 %v250
    %v290 = vunpack.c.l.b16 %v251
    %v291 = vunpack.c.l.b16 %v252
    %v292 = vunpack.c.l.b16 %v253
    %v293 = vunpack.c.l.b16 %v254
    %v294 = vunpack.c.l.b16 %v255
    %v295 = vunpack.c.l.b16 %v256
    %v296 = vunpack.c.l.b16 %v257
    %v297 = vunpack.c.l.b16 %v258
    %v298 = vunpack.c.l.b16 %v259
    %v299 = vunpack.c.l.b16 %v260
    %v300 = vunpack.c.l.b16 %v261
    %v301 = vunpack.c.l.b16 %v262
    %v302 = vunpack.c.l.b16 %v263
    %v303 = vunpack.c.l.b16 %v264
    %v304 = vpack.c.b16 %v289, %v288
    %v305 = vpack.c.b16 %v291, %v290
    %v306 = vpack.c.b16 %v293, %v292
    %v307 = vpack.c.b16 %v295, %v294
    %v308 = vpack.c.b16 %v297, %v296
    %v309 = vpack.c.b16 %v299, %v298
    %v310 = vpack.c.b16 %v301, %v300
    %v311 = vpack.c.b16 %v303, %v302
    %320 = vmatprep.subr.bf16.mxu0 0
    %321 = vmatpush1.bf16.msra.mxu0 %v311
    %322 = vmatprep.subr.bf16.mxu0 0
    %323 = vmatpush1.bf16.msra.mxu0 %v310
    %324 = vmatprep.subr.bf16.mxu0 0
    %325 = vmatpush1.bf16.msra.mxu0 %v309
    %326 = vmatprep.subr.bf16.mxu0 0
    %327 = vmatpush1.bf16.msra.mxu0 %v308
    %328 = vmatprep.subr.bf16.mxu0 0
    %329 = vmatpush1.bf16.msra.mxu0 %v307
    %330 = vmatprep.subr.bf16.mxu0 0
    %331 = vmatpush1.bf16.msra.mxu0 %v306
    %332 = vmatprep.subr.bf16.mxu0 0
    %333 = vmatpush1.bf16.msra.mxu0 %v305
    %334 = vmatprep.subr.bf16.mxu0 0
    %335 = vmatpush1.bf16.msra.mxu0 %v304
    %336 = vmatprep.subr.bf16.mxu0 0
    %337 = vmatpush2.bf16.msra.mxu0 0
    %338 = vmatprep.subr.bf16.mxu0 0
    %339 = vmatpush2.bf16.msra.mxu0 0
    %340 = vmatprep.subr.bf16.mxu0 0
    %341 = vmatpush2.bf16.msra.mxu0 0
    %342 = vmatprep.subr.bf16.mxu0 0
    %343 = vmatpush2.bf16.msra.mxu0 0
    %344 = vmatprep.subr.bf16.mxu0 0
    %345 = vmatpush2.bf16.msra.mxu0 0
    %346 = vmatprep.subr.bf16.mxu0 0
    %347 = vmatpush2.bf16.msra.mxu0 0
    %348 = vmatprep.subr.bf16.mxu0 0
    %349 = vmatpush2.bf16.msra.mxu0 0
    %350 = vmatprep.subr.bf16.mxu0 0
    %351 = vmatpush2.bf16.msra.mxu0 0
    %352 = vmatprep.mubr.bf16.mxu0 0
    %353 = vmatmul.mubr.bf16.gmra.mxu0 %v248
    %v354 = vpop.f32.mrf.mxu0
    %v355 = vadd.f32 %v270, %v354
    %v356 = vpop.f32.mrf.mxu0
    %v357 = vpop.f32.mrf.mxu0
    %v358 = vpop.f32.mrf.mxu0
    %359 = vdwg.mxu0
    %v360 = vmax.f32 %v355, 0.0
    %v361 = vpack.c.bf16 %v360, %v360
    %v362 = vld [vmem:[#allocation6] sm:$0xf]
    %v363 = vld [vmem:[#allocation6 + $0x4] sm:$0xf]
    %v364 = vld [vmem:[#allocation6 + $0x8] sm:$0xf]
    %v365 = vld [vmem:[#allocation6 + $0xc] sm:$0xf]
    %v366 = vld [vmem:[#allocation6 + $0x10] sm:$0xf]
    %v367 = vld [vmem:[#allocation6 + $0x14] sm:$0xf]
    %v368 = vld [vmem:[#allocation6 + $0x18] sm:$0xf]
    %v369 = vld [vmem:[#allocation6 + $0x1c] sm:$0xf]
    %v370 = vld [vmem:[#allocation6 + $0x20] sm:$0xf]
    %v371 = vld [vmem:[#allocation6 + $0x24] sm:$0xf]
    %v372 = vld [vmem:[#allocation6 + $0x28] sm:$0xf]
    %v373 = vld [vmem:[#allocation6 + $0x2c] sm:$0xf]
    %v374 = vld [vmem:[#allocation6 + $0x30] sm:$0xf]
    %v375 = vld [vmem:[#allocation6 + $0x34] sm:$0xf]
    %v376 = vld [vmem:[#allocation6 + $0x38] sm:$0xf]
    %v377 = vld [vmem:[#allocation6 + $0x3c] sm:$0xf]
    %v378 = vld [vmem:[%s6] sm:$0x1]
    %v380 = vlaneseq
    %v381 = vshrl.u32 %v380, 7
    %v382 = vsub.s32 0, %v381
    %v383 = vrot.slane %v378, %v382
    %v401 = vunpack.c.l.b16 %v362
    %v402 = vunpack.c.l.b16 %v363
    %v403 = vunpack.c.l.b16 %v364
    %v404 = vunpack.c.l.b16 %v365
    %v405 = vunpack.c.l.b16 %v366
    %v406 = vunpack.c.l.b16 %v367
    %v407 = vunpack.c.l.b16 %v368
    %v408 = vunpack.c.l.b16 %v369
    %v409 = vunpack.c.l.b16 %v370
    %v410 = vunpack.c.l.b16 %v371
    %v411 = vunpack.c.l.b16 %v372
    %v412 = vunpack.c.l.b16 %v373
    %v413 = vunpack.c.l.b16 %v374
    %v414 = vunpack.c.l.b16 %v375
    %v415 = vunpack.c.l.b16 %v376
    %v416 = vunpack.c.l.b16 %v377
    %v417 = vpack.c.b16 %v402, %v401
    %v418 = vpack.c.b16 %v404, %v403
    %v419 = vpack.c.b16 %v406, %v405
    %v420 = vpack.c.b16 %v408, %v407
    %v421 = vpack.c.b16 %v410, %v409
    %v422 = vpack.c.b16 %v412, %v411
    %v423 = vpack.c.b16 %v414, %v413
    %v424 = vpack.c.b16 %v416, %v415
    %433 = vmatprep.subr.bf16.mxu0 0
    %434 = vmatpush1.bf16.msra.mxu0 %v424
    %435 = vmatprep.subr.bf16.mxu0 0
    %436 = vmatpush1.bf16.msra.mxu0 %v423
    %437 = vmatprep.subr.bf16.mxu0 0
    %438 = vmatpush1.bf16.msra.mxu0 %v422
    %439 = vmatprep.subr.bf16.mxu0 0
    %440 = vmatpush1.bf16.msra.mxu0 %v421
    %441 = vmatprep.subr.bf16.mxu0 0
    %442 = vmatpush1.bf16.msra.mxu0 %v420
    %443 = vmatprep.subr.bf16.mxu0 0
    %444 = vmatpush1.bf16.msra.mxu0 %v419
    %445 = vmatprep.subr.bf16.mxu0 0
    %446 = vmatpush1.bf16.msra.mxu0 %v418
    %447 = vmatprep.subr.bf16.mxu0 0
    %448 = vmatpush1.bf16.msra.mxu0 %v417
    %449 = vmatprep.subr.bf16.mxu0 0
    %450 = vmatpush2.bf16.msra.mxu0 0
    %451 = vmatprep.subr.bf16.mxu0 0
    %452 = vmatpush2.bf16.msra.mxu0 0
    %453 = vmatprep.subr.bf16.mxu0 0
    %454 = vmatpush2.bf16.msra.mxu0 0
    %455 = vmatprep.subr.bf16.mxu0 0
    %456 = vmatpush2.bf16.msra.mxu0 0
    %457 = vmatprep.subr.bf16.mxu0 0
    %458 = vmatpush2.bf16.msra.mxu0 0
    %459 = vmatprep.subr.bf16.mxu0 0
    %460 = vmatpush2.bf16.msra.mxu0 0
    %461 = vmatprep.subr.bf16.mxu0 0
    %462 = vmatpush2.bf16.msra.mxu0 0
    %463 = vmatprep.subr.bf16.mxu0 0
    %464 = vmatpush2.bf16.msra.mxu0 0
    %465 = vmatprep.mubr.bf16.mxu0 0
    %466 = vmatmul.mubr.bf16.gmra.mxu0 %v361
    %v467 = vpop.f32.mrf.mxu0
    %v468 = vadd.f32 %v383, %v467
    %v469 = vpop.f32.mrf.mxu0
    %v470 = vpop.f32.mrf.mxu0
    %v471 = vpop.f32.mrf.mxu0
    %472 = vdwg.mxu0
    %v473 = vpack.c.bf16 %v468, %v468
    %474 = vst [vmem:[%s7] sm:$0xf] %v473
    // Predicated region
    $region42: #{_lambda_.1} parent=1 // pred_check
      _
    $region43: #{_lambda_.1} parent=1 // pred_check_branch
      %476 = sbr.rel (0) target = $region45
    $region44: #{_lambda_.1} parent=1 // pred_region
      _
    $region45: #{_lambda_.1} parent=1 // pred_fallthru
      _
    // Predicated region
    $region46: #{_lambda_.1} parent=1 // pred_check
      _
    $region47: #{_lambda_.1} parent=1 // pred_check_branch
      %478 = sbr.rel (0) target = $region49
    $region48: #{_lambda_.1} parent=1 // pred_region
      _
    $region49: #{_lambda_.1} parent=1 // pred_fallthru
      _
    %479 = vsyncpa [#allocation3], 1
    %480 = vsyncpa [#allocation5], 1

</llo_original>
